<compile_context>
chip_gen: v7x
topology: tpu7x:2x2x1
jax: 0.10.0
libtpu: 0.0.40
codegen_flags: <defaults>
</compile_context>

<pallas_src>
import math

import jax
import jax.numpy as jnp
from jax import lax
from jax.experimental import pallas as pl
from jax.experimental.pallas import tpu as pltpu


def _round_up(x, m):
    return (x + m - 1) // m * m


def rnn_forward(x, w_ih, w_hh, b_ih, b_hh, *, matmul_dtype=jnp.bfloat16):
    """x: (B, T, I) float32. Returns (B*T, H) float32, matching
    RnnModelBase.forward's `output.view(-1, hidden_size)` (batch_first row order)."""
    B, T, I = x.shape
    H = w_ih.shape[0]

    H_pad = _round_up(H, 128)   # lane-dense weights / bias / output
    M = B * T
    M_pad = _round_up(M, 8)     # sublane-aligned row count

    # ---- one-time parameter prep (outside the kernel) ----------------------
    # Fold the two biases, pad to lane multiples with zeros (padded h columns
    # provably stay exactly 0 through the recurrence), cast matmul operands to bf16.
    wih_t = jnp.zeros((I, H_pad), matmul_dtype).at[:, :H].set(
        jnp.transpose(w_ih).astype(matmul_dtype))
    whh_t = jnp.zeros((H_pad, H_pad), matmul_dtype).at[:H, :H].set(
        jnp.transpose(w_hh).astype(matmul_dtype))
    bias = jnp.zeros((1, H_pad), jnp.float32).at[0, :H].set(
        (b_ih + b_hh).astype(jnp.float32))

    # Batch-first row order: row index = b*T + t  (free view, no transpose).
    x2 = x.reshape(M, I).astype(matmul_dtype)
    if M_pad != M:
        x2 = jnp.pad(x2, ((0, M_pad - M), (0, 0)))

    def kernel(x_ref, wih_ref, whh_ref, bias_ref, out_ref, pre_ref):
        # (1) Hoisted, time-parallel input projection: one big GEMM, biases folded.
        pre_ref[...] = (
            jnp.dot(x_ref[...], wih_ref[...], preferred_element_type=jnp.float32)
            + bias_ref[...]
        )

        whh = whh_ref[...]  # (H_pad, H_pad) bf16, resident across the whole loop

        # (2) Sequential recurrence fully inside the kernel: per step only the
        #     HxH matmul + tanh; hidden state is the fori_loop carry (registers).
        def step(t, h):
            # Gather the B rows belonging to timestep t (row = b*T + t).
            pre_t = jnp.concatenate(
                [pre_ref[pl.ds(b * T + t, 1), :] for b in range(B)], axis=0
            )  # (B, H_pad) f32
            h_new = jnp.tanh(
                pre_t
                + jnp.dot(h.astype(whh.dtype), whh,
                          preferred_element_type=jnp.float32)
            )
            # Scatter back to batch-first rows (full 128-lane stores).
            for b in range(B):
                out_ref[pl.ds(b * T + t, 1), :] = (
                    h_new[b:b + 1, :].astype(out_ref.dtype))
            return h_new

        h0 = jnp.zeros((B, H_pad), jnp.float32)  # hidden = zeros(...)
        lax.fori_loop(0, T, step, h0, unroll=(T <= 16))

    # Everything (x rows, both weights, bias, pre-activations, output) is VMEM
    # resident; set the scoped limit explicitly with headroom (v6e 32MiB default,
    # v7x 64MiB physical).
    vmem_bytes = 2 * (
        x2.size * x2.dtype.itemsize
        + wih_t.size * wih_t.dtype.itemsize
        + whh_t.size * whh_t.dtype.itemsize
        + bias.size * 4
        + 2 * M_pad * H_pad * 4
    ) + (4 << 20)
    vmem_limit = int(min(max(vmem_bytes, 16 << 20), 56 << 20))

    out = pl.pallas_call(
        kernel,
        out_shape=jax.ShapeDtypeStruct((M_pad, H_pad), jnp.float32),
        grid_spec=pltpu.PrefetchScalarGridSpec(
            num_scalar_prefetch=0,
            grid=(1,),
            in_specs=[
                pl.BlockSpec((M_pad, I), lambda i: (0, 0)),      # all x rows
                pl.BlockSpec((I, H_pad), lambda i: (0, 0)),      # W_ih^T (resident)
                pl.BlockSpec((H_pad, H_pad), lambda i: (0, 0)),  # W_hh^T (resident)
                pl.BlockSpec((1, H_pad), lambda i: (0, 0)),      # b_ih + b_hh
            ],
            out_specs=pl.BlockSpec((M_pad, H_pad), lambda i: (0, 0)),
            scratch_shapes=[pltpu.VMEM((M_pad, H_pad), jnp.float32)],  # pre-acts
        ),
        compiler_params=pltpu.CompilerParams(
            dimension_semantics=("arbitrary",),
            vmem_limit_bytes=vmem_limit,
        ),
    )(x2, wih_t, whh_t, bias)

    # Rows are already in (b, t) order == output.view(-1, hidden_size); drop padding.
    return out[:M, :H]


def _init_params(key, input_size, hidden_size):
    # Deterministic init mimicking nn.RNN default: U(-1/sqrt(H), 1/sqrt(H)).
    k = 1.0 / math.sqrt(hidden_size)
    k1, k2, k3, k4 = jax.random.split(key, 4)
    w_ih = jax.random.uniform(k1, (hidden_size, input_size), jnp.float32, -k, k)
    w_hh = jax.random.uniform(k2, (hidden_size, hidden_size), jnp.float32, -k, k)
    b_ih = jax.random.uniform(k3, (hidden_size,), jnp.float32, -k, k)
    b_hh = jax.random.uniform(k4, (hidden_size,), jnp.float32, -k, k)
    return w_ih, w_hh, b_ih, b_hh


def _rnn_reference(x, w_ih, w_hh, b_ih, b_hh, matmul_dtype=jnp.bfloat16):
    """Pure-JAX reference of the same recurrence (same bf16 matmul precision)."""
    B, T, I = x.shape
    H = w_ih.shape[0]
    wih_t = jnp.transpose(w_ih).astype(matmul_dtype)
    whh_t = jnp.transpose(w_hh).astype(matmul_dtype)
    bias = (b_ih + b_hh).astype(jnp.float32)
    h = jnp.zeros((B, H), jnp.float32)
    outs = []
    for t in range(T):
        pre = (
            jnp.dot(x[:, t, :].astype(matmul_dtype), wih_t,
                    preferred_element_type=jnp.float32)
            + jnp.dot(h.astype(matmul_dtype), whh_t,
                      preferred_element_type=jnp.float32)
            + bias
        )
        h = jnp.tanh(pre)
        outs.append(h)
    out_btH = jnp.stack(outs, axis=1)  # (B, T, H)
    return out_btH.reshape(-1, H)


if __name__ == "__main__":
    B, T, I, H = 2, 8, 16, 32

    key = jax.random.PRNGKey(0)
    kx, kp = jax.random.split(key)
    x = jax.random.normal(kx, (B, T, I), jnp.float32)
    w_ih, w_hh, b_ih, b_hh = _init_params(kp, I, H)

    out = rnn_forward(x, w_ih, w_hh, b_ih, b_hh)
    out = jax.block_until_ready(out)

    ref = _rnn_reference(x, w_ih, w_hh, b_ih, b_hh)
    assert out.shape == (B * T, H), out.shape
    assert jnp.allclose(out, ref, atol=2e-2, rtol=2e-2), float(
        jnp.max(jnp.abs(out - ref)))

    print("KERNEL_OK")
</pallas_src>

<mosaic_0001>
module attributes {stable_mosaic.version = 11 : i64} {
  func.func @kernel(%arg0: i32, %arg1: memref<16x16xbf16, #tpu.memory_space<vmem>>, %arg2: memref<16x128xbf16, #tpu.memory_space<vmem>>, %arg3: memref<128x128xbf16, #tpu.memory_space<vmem>>, %arg4: memref<1x128xf32, #tpu.memory_space<vmem>>, %arg5: memref<16x128xf32, #tpu.memory_space<vmem>>, %arg6: memref<16x128xf32, #tpu.memory_space<vmem>>) attributes {dimension_semantics = [#tpu.dimension_semantics<arbitrary>], iteration_bounds = array<i64: 1>, scalar_prefetch = 0 : i64, scratch_operands = 1 : i64, tpu.core_type = #tpu.core_type<tc>, window_params = [{pipeline_mode = #tpu.pipeline_mode<synchronous>, transform_indices = @transform_0, window_bounds = array<i64: 16, 16>}, {pipeline_mode = #tpu.pipeline_mode<synchronous>, transform_indices = @transform_1, window_bounds = array<i64: 16, 128>}, {pipeline_mode = #tpu.pipeline_mode<synchronous>, transform_indices = @transform_2, window_bounds = array<i64: 128, 128>}, {pipeline_mode = #tpu.pipeline_mode<synchronous>, transform_indices = @transform_3, window_bounds = array<i64: 1, 128>}, {pipeline_mode = #tpu.pipeline_mode<synchronous>, transform_indices = @transform_4, window_bounds = array<i64: 16, 128>}]} {
    %c0 = arith.constant 0 : index
    %c0_0 = arith.constant 0 : index
    %0 = vector.load %arg1[%c0, %c0_0] : memref<16x16xbf16, #tpu.memory_space<vmem>>, vector<16x16xbf16>
    %c0_1 = arith.constant 0 : index
    %c0_2 = arith.constant 0 : index
    %1 = vector.load %arg2[%c0_1, %c0_2] : memref<16x128xbf16, #tpu.memory_space<vmem>>, vector<16x128xbf16>
    %cst = arith.constant dense<0.000000e+00> : vector<16x128xf32>
    %2 = tpu.matmul %0, %1, %cst {dimension_numbers = #tpu.dot_dimension_numbers<[1], [0], [0], [1], [0, 0, 1, 1], [], []>} : vector<16x16xbf16>, vector<16x128xbf16>, vector<16x128xf32> -> vector<16x128xf32>
    %c0_3 = arith.constant 0 : index
    %c0_4 = arith.constant 0 : index
    %3 = vector.load %arg4[%c0_3, %c0_4] : memref<1x128xf32, #tpu.memory_space<vmem>>, vector<1x128xf32>
    %4 = vector.broadcast %3 : vector<1x128xf32> to vector<16x128xf32>
    %5 = arith.addf %2, %4 : vector<16x128xf32>
    %c0_5 = arith.constant 0 : index
    %c0_6 = arith.constant 0 : index
    %6 = vector.load %arg6[%c0_5, %c0_6] : memref<16x128xf32, #tpu.memory_space<vmem>>, vector<16x128xf32>
    tpu.vector_store %arg6[%c0_5, %c0_6], %5 {strides = array<i32>} : memref<16x128xf32, #tpu.memory_space<vmem>>, vector<16x128xf32>,
    %c0_7 = arith.constant 0 : index
    %c0_8 = arith.constant 0 : index
    %7 = vector.load %arg3[%c0_7, %c0_8] : memref<128x128xbf16, #tpu.memory_space<vmem>>, vector<128x128xbf16>
    %cst_9 = arith.constant 0.000000e+00 : f32
    %8 = vector.broadcast %cst_9 : f32 to vector<2x128xf32>
    %c0_i32 = arith.constant 0 : i32
    %c0_i32_10 = arith.constant 0 : i32
    %9 = arith.addi %c0_i32_10, %c0_i32 : i32
    %10 = arith.index_cast %9 : i32 to index
    %c0_11 = arith.constant 0 : index
    %11 = vector.load %arg6[%10, %c0_11] : memref<16x128xf32, #tpu.memory_space<vmem>>, vector<1x128xf32>
    %c8_i32 = arith.constant 8 : i32
    %12 = arith.addi %c8_i32, %c0_i32 : i32
    %13 = arith.index_cast %12 : i32 to index
    %c0_12 = arith.constant 0 : index
    %14 = vector.load %arg6[%13, %c0_12] : memref<16x128xf32, #tpu.memory_space<vmem>>, vector<1x128xf32>
    %15 = tpu.concatenate %11, %14 in 0 : vector<1x128xf32>, vector<1x128xf32> -> vector<2x128xf32>
    %16 = arith.truncf %8 : vector<2x128xf32> to vector<2x128xbf16>
    %cst_13 = arith.constant dense<0.000000e+00> : vector<2x128xf32>
    %17 = tpu.matmul %16, %7, %cst_13 {dimension_numbers = #tpu.dot_dimension_numbers<[1], [0], [0], [1], [0, 0, 1, 1], [], []>} : vector<2x128xbf16>, vector<128x128xbf16>, vector<2x128xf32> -> vector<2x128xf32>
    %18 = arith.addf %15, %17 : vector<2x128xf32>
    %19 = math.tanh %18 : vector<2x128xf32>
    %20 = vector.extract_strided_slice %19 {offsets = [0, 0], sizes = [1, 128], strides = [1, 1]} : vector<2x128xf32> to vector<1x128xf32>
    %c0_i32_14 = arith.constant 0 : i32
    %21 = arith.addi %c0_i32_14, %c0_i32 : i32
    %22 = arith.index_cast %21 : i32 to index
    %c0_15 = arith.constant 0 : index
    %23 = vector.load %arg5[%22, %c0_15] : memref<16x128xf32, #tpu.memory_space<vmem>>, vector<1x128xf32>
    tpu.vector_store %arg5[%22, %c0_15], %20 {strides = array<i32>} : memref<16x128xf32, #tpu.memory_space<vmem>>, vector<1x128xf32>,
    %24 = vector.extract_strided_slice %19 {offsets = [1, 0], sizes = [1, 128], strides = [1, 1]} : vector<2x128xf32> to vector<1x128xf32>
    %c8_i32_16 = arith.constant 8 : i32
    %25 = arith.addi %c8_i32_16, %c0_i32 : i32
    %26 = arith.index_cast %25 : i32 to index
    %c0_17 = arith.constant 0 : index
    %27 = vector.load %arg5[%26, %c0_17] : memref<16x128xf32, #tpu.memory_space<vmem>>, vector<1x128xf32>
    tpu.vector_store %arg5[%26, %c0_17], %24 {strides = array<i32>} : memref<16x128xf32, #tpu.memory_space<vmem>>, vector<1x128xf32>,
    %c1_i32 = arith.constant 1 : i32
    %c0_i32_18 = arith.constant 0 : i32
    %28 = arith.addi %c0_i32_18, %c1_i32 : i32
    %29 = arith.index_cast %28 : i32 to index
    %c0_19 = arith.constant 0 : index
    %30 = vector.load %arg6[%29, %c0_19] : memref<16x128xf32, #tpu.memory_space<vmem>>, vector<1x128xf32>
    %c8_i32_20 = arith.constant 8 : i32
    %31 = arith.addi %c8_i32_20, %c1_i32 : i32
    %32 = arith.index_cast %31 : i32 to index
    %c0_21 = arith.constant 0 : index
    %33 = vector.load %arg6[%32, %c0_21] : memref<16x128xf32, #tpu.memory_space<vmem>>, vector<1x128xf32>
    %34 = tpu.concatenate %30, %33 in 0 : vector<1x128xf32>, vector<1x128xf32> -> vector<2x128xf32>
    %35 = arith.truncf %19 : vector<2x128xf32> to vector<2x128xbf16>
    %cst_22 = arith.constant dense<0.000000e+00> : vector<2x128xf32>
    %36 = tpu.matmul %35, %7, %cst_22 {dimension_numbers = #tpu.dot_dimension_numbers<[1], [0], [0], [1], [0, 0, 1, 1], [], []>} : vector<2x128xbf16>, vector<128x128xbf16>, vector<2x128xf32> -> vector<2x128xf32>
    %37 = arith.addf %34, %36 : vector<2x128xf32>
    %38 = math.tanh %37 : vector<2x128xf32>
    %39 = vector.extract_strided_slice %38 {offsets = [0, 0], sizes = [1, 128], strides = [1, 1]} : vector<2x128xf32> to vector<1x128xf32>
    %c0_i32_23 = arith.constant 0 : i32
    %40 = arith.addi %c0_i32_23, %c1_i32 : i32
    %41 = arith.index_cast %40 : i32 to index
    %c0_24 = arith.constant 0 : index
    %42 = vector.load %arg5[%41, %c0_24] : memref<16x128xf32, #tpu.memory_space<vmem>>, vector<1x128xf32>
    tpu.vector_store %arg5[%41, %c0_24], %39 {strides = array<i32>} : memref<16x128xf32, #tpu.memory_space<vmem>>, vector<1x128xf32>,
    %43 = vector.extract_strided_slice %38 {offsets = [1, 0], sizes = [1, 128], strides = [1, 1]} : vector<2x128xf32> to vector<1x128xf32>
    %c8_i32_25 = arith.constant 8 : i32
    %44 = arith.addi %c8_i32_25, %c1_i32 : i32
    %45 = arith.index_cast %44 : i32 to index
    %c0_26 = arith.constant 0 : index
    %46 = vector.load %arg5[%45, %c0_26] : memref<16x128xf32, #tpu.memory_space<vmem>>, vector<1x128xf32>
    tpu.vector_store %arg5[%45, %c0_26], %43 {strides = array<i32>} : memref<16x128xf32, #tpu.memory_space<vmem>>, vector<1x128xf32>,
    %c2_i32 = arith.constant 2 : i32
    %c0_i32_27 = arith.constant 0 : i32
    %47 = arith.addi %c0_i32_27, %c2_i32 : i32
    %48 = arith.index_cast %47 : i32 to index
    %c0_28 = arith.constant 0 : index
    %49 = vector.load %arg6[%48, %c0_28] : memref<16x128xf32, #tpu.memory_space<vmem>>, vector<1x128xf32>
    %c8_i32_29 = arith.constant 8 : i32
    %50 = arith.addi %c8_i32_29, %c2_i32 : i32
    %51 = arith.index_cast %50 : i32 to index
    %c0_30 = arith.constant 0 : index
    %52 = vector.load %arg6[%51, %c0_30] : memref<16x128xf32, #tpu.memory_space<vmem>>, vector<1x128xf32>
    %53 = tpu.concatenate %49, %52 in 0 : vector<1x128xf32>, vector<1x128xf32> -> vector<2x128xf32>
    %54 = arith.truncf %38 : vector<2x128xf32> to vector<2x128xbf16>
    %cst_31 = arith.constant dense<0.000000e+00> : vector<2x128xf32>
    %55 = tpu.matmul %54, %7, %cst_31 {dimension_numbers = #tpu.dot_dimension_numbers<[1], [0], [0], [1], [0, 0, 1, 1], [], []>} : vector<2x128xbf16>, vector<128x128xbf16>, vector<2x128xf32> -> vector<2x128xf32>
    %56 = arith.addf %53, %55 : vector<2x128xf32>
    %57 = math.tanh %56 : vector<2x128xf32>
    %58 = vector.extract_strided_slice %57 {offsets = [0, 0], sizes = [1, 128], strides = [1, 1]} : vector<2x128xf32> to vector<1x128xf32>
    %c0_i32_32 = arith.constant 0 : i32
    %59 = arith.addi %c0_i32_32, %c2_i32 : i32
    %60 = arith.index_cast %59 : i32 to index
    %c0_33 = arith.constant 0 : index
    %61 = vector.load %arg5[%60, %c0_33] : memref<16x128xf32, #tpu.memory_space<vmem>>, vector<1x128xf32>
    tpu.vector_store %arg5[%60, %c0_33], %58 {strides = array<i32>} : memref<16x128xf32, #tpu.memory_space<vmem>>, vector<1x128xf32>,
    %62 = vector.extract_strided_slice %57 {offsets = [1, 0], sizes = [1, 128], strides = [1, 1]} : vector<2x128xf32> to vector<1x128xf32>
    %c8_i32_34 = arith.constant 8 : i32
    %63 = arith.addi %c8_i32_34, %c2_i32 : i32
    %64 = arith.index_cast %63 : i32 to index
    %c0_35 = arith.constant 0 : index
    %65 = vector.load %arg5[%64, %c0_35] : memref<16x128xf32, #tpu.memory_space<vmem>>, vector<1x128xf32>
    tpu.vector_store %arg5[%64, %c0_35], %62 {strides = array<i32>} : memref<16x128xf32, #tpu.memory_space<vmem>>, vector<1x128xf32>,
    %c3_i32 = arith.constant 3 : i32
    %c0_i32_36 = arith.constant 0 : i32
    %66 = arith.addi %c0_i32_36, %c3_i32 : i32
    %67 = arith.index_cast %66 : i32 to index
    %c0_37 = arith.constant 0 : index
    %68 = vector.load %arg6[%67, %c0_37] : memref<16x128xf32, #tpu.memory_space<vmem>>, vector<1x128xf32>
    %c8_i32_38 = arith.constant 8 : i32
    %69 = arith.addi %c8_i32_38, %c3_i32 : i32
    %70 = arith.index_cast %69 : i32 to index
    %c0_39 = arith.constant 0 : index
    %71 = vector.load %arg6[%70, %c0_39] : memref<16x128xf32, #tpu.memory_space<vmem>>, vector<1x128xf32>
    %72 = tpu.concatenate %68, %71 in 0 : vector<1x128xf32>, vector<1x128xf32> -> vector<2x128xf32>
    %73 = arith.truncf %57 : vector<2x128xf32> to vector<2x128xbf16>
    %cst_40 = arith.constant dense<0.000000e+00> : vector<2x128xf32>
    %74 = tpu.matmul %73, %7, %cst_40 {dimension_numbers = #tpu.dot_dimension_numbers<[1], [0], [0], [1], [0, 0, 1, 1], [], []>} : vector<2x128xbf16>, vector<128x128xbf16>, vector<2x128xf32> -> vector<2x128xf32>
    %75 = arith.addf %72, %74 : vector<2x128xf32>
    %76 = math.tanh %75 : vector<2x128xf32>
    %77 = vector.extract_strided_slice %76 {offsets = [0, 0], sizes = [1, 128], strides = [1, 1]} : vector<2x128xf32> to vector<1x128xf32>
    %c0_i32_41 = arith.constant 0 : i32
    %78 = arith.addi %c0_i32_41, %c3_i32 : i32
    %79 = arith.index_cast %78 : i32 to index
    %c0_42 = arith.constant 0 : index
    %80 = vector.load %arg5[%79, %c0_42] : memref<16x128xf32, #tpu.memory_space<vmem>>, vector<1x128xf32>
    tpu.vector_store %arg5[%79, %c0_42], %77 {strides = array<i32>} : memref<16x128xf32, #tpu.memory_space<vmem>>, vector<1x128xf32>,
    %81 = vector.extract_strided_slice %76 {offsets = [1, 0], sizes = [1, 128], strides = [1, 1]} : vector<2x128xf32> to vector<1x128xf32>
    %c8_i32_43 = arith.constant 8 : i32
    %82 = arith.addi %c8_i32_43, %c3_i32 : i32
    %83 = arith.index_cast %82 : i32 to index
    %c0_44 = arith.constant 0 : index
    %84 = vector.load %arg5[%83, %c0_44] : memref<16x128xf32, #tpu.memory_space<vmem>>, vector<1x128xf32>
    tpu.vector_store %arg5[%83, %c0_44], %81 {strides = array<i32>} : memref<16x128xf32, #tpu.memory_space<vmem>>, vector<1x128xf32>,
    %c4_i32 = arith.constant 4 : i32
    %c0_i32_45 = arith.constant 0 : i32
    %85 = arith.addi %c0_i32_45, %c4_i32 : i32
    %86 = arith.index_cast %85 : i32 to index
    %c0_46 = arith.constant 0 : index
    %87 = vector.load %arg6[%86, %c0_46] : memref<16x128xf32, #tpu.memory_space<vmem>>, vector<1x128xf32>
    %c8_i32_47 = arith.constant 8 : i32
    %88 = arith.addi %c8_i32_47, %c4_i32 : i32
    %89 = arith.index_cast %88 : i32 to index
    %c0_48 = arith.constant 0 : index
    %90 = vector.load %arg6[%89, %c0_48] : memref<16x128xf32, #tpu.memory_space<vmem>>, vector<1x128xf32>
    %91 = tpu.concatenate %87, %90 in 0 : vector<1x128xf32>, vector<1x128xf32> -> vector<2x128xf32>
    %92 = arith.truncf %76 : vector<2x128xf32> to vector<2x128xbf16>
    %cst_49 = arith.constant dense<0.000000e+00> : vector<2x128xf32>
    %93 = tpu.matmul %92, %7, %cst_49 {dimension_numbers = #tpu.dot_dimension_numbers<[1], [0], [0], [1], [0, 0, 1, 1], [], []>} : vector<2x128xbf16>, vector<128x128xbf16>, vector<2x128xf32> -> vector<2x128xf32>
    %94 = arith.addf %91, %93 : vector<2x128xf32>
    %95 = math.tanh %94 : vector<2x128xf32>
    %96 = vector.extract_strided_slice %95 {offsets = [0, 0], sizes = [1, 128], strides = [1, 1]} : vector<2x128xf32> to vector<1x128xf32>
    %c0_i32_50 = arith.constant 0 : i32
    %97 = arith.addi %c0_i32_50, %c4_i32 : i32
    %98 = arith.index_cast %97 : i32 to index
    %c0_51 = arith.constant 0 : index
    %99 = vector.load %arg5[%98, %c0_51] : memref<16x128xf32, #tpu.memory_space<vmem>>, vector<1x128xf32>
    tpu.vector_store %arg5[%98, %c0_51], %96 {strides = array<i32>} : memref<16x128xf32, #tpu.memory_space<vmem>>, vector<1x128xf32>,
    %100 = vector.extract_strided_slice %95 {offsets = [1, 0], sizes = [1, 128], strides = [1, 1]} : vector<2x128xf32> to vector<1x128xf32>
    %c8_i32_52 = arith.constant 8 : i32
    %101 = arith.addi %c8_i32_52, %c4_i32 : i32
    %102 = arith.index_cast %101 : i32 to index
    %c0_53 = arith.constant 0 : index
    %103 = vector.load %arg5[%102, %c0_53] : memref<16x128xf32, #tpu.memory_space<vmem>>, vector<1x128xf32>
    tpu.vector_store %arg5[%102, %c0_53], %100 {strides = array<i32>} : memref<16x128xf32, #tpu.memory_space<vmem>>, vector<1x128xf32>,
    %c5_i32 = arith.constant 5 : i32
    %c0_i32_54 = arith.constant 0 : i32
    %104 = arith.addi %c0_i32_54, %c5_i32 : i32
    %105 = arith.index_cast %104 : i32 to index
    %c0_55 = arith.constant 0 : index
    %106 = vector.load %arg6[%105, %c0_55] : memref<16x128xf32, #tpu.memory_space<vmem>>, vector<1x128xf32>
    %c8_i32_56 = arith.constant 8 : i32
    %107 = arith.addi %c8_i32_56, %c5_i32 : i32
    %108 = arith.index_cast %107 : i32 to index
    %c0_57 = arith.constant 0 : index
    %109 = vector.load %arg6[%108, %c0_57] : memref<16x128xf32, #tpu.memory_space<vmem>>, vector<1x128xf32>
    %110 = tpu.concatenate %106, %109 in 0 : vector<1x128xf32>, vector<1x128xf32> -> vector<2x128xf32>
    %111 = arith.truncf %95 : vector<2x128xf32> to vector<2x128xbf16>
    %cst_58 = arith.constant dense<0.000000e+00> : vector<2x128xf32>
    %112 = tpu.matmul %111, %7, %cst_58 {dimension_numbers = #tpu.dot_dimension_numbers<[1], [0], [0], [1], [0, 0, 1, 1], [], []>} : vector<2x128xbf16>, vector<128x128xbf16>, vector<2x128xf32> -> vector<2x128xf32>
    %113 = arith.addf %110, %112 : vector<2x128xf32>
    %114 = math.tanh %113 : vector<2x128xf32>
    %115 = vector.extract_strided_slice %114 {offsets = [0, 0], sizes = [1, 128], strides = [1, 1]} : vector<2x128xf32> to vector<1x128xf32>
    %c0_i32_59 = arith.constant 0 : i32
    %116 = arith.addi %c0_i32_59, %c5_i32 : i32
    %117 = arith.index_cast %116 : i32 to index
    %c0_60 = arith.constant 0 : index
    %118 = vector.load %arg5[%117, %c0_60] : memref<16x128xf32, #tpu.memory_space<vmem>>, vector<1x128xf32>
    tpu.vector_store %arg5[%117, %c0_60], %115 {strides = array<i32>} : memref<16x128xf32, #tpu.memory_space<vmem>>, vector<1x128xf32>,
    %119 = vector.extract_strided_slice %114 {offsets = [1, 0], sizes = [1, 128], strides = [1, 1]} : vector<2x128xf32> to vector<1x128xf32>
    %c8_i32_61 = arith.constant 8 : i32
    %120 = arith.addi %c8_i32_61, %c5_i32 : i32
    %121 = arith.index_cast %120 : i32 to index
    %c0_62 = arith.constant 0 : index
    %122 = vector.load %arg5[%121, %c0_62] : memref<16x128xf32, #tpu.memory_space<vmem>>, vector<1x128xf32>
    tpu.vector_store %arg5[%121, %c0_62], %119 {strides = array<i32>} : memref<16x128xf32, #tpu.memory_space<vmem>>, vector<1x128xf32>,
    %c6_i32 = arith.constant 6 : i32
    %c0_i32_63 = arith.constant 0 : i32
    %123 = arith.addi %c0_i32_63, %c6_i32 : i32
    %124 = arith.index_cast %123 : i32 to index
    %c0_64 = arith.constant 0 : index
    %125 = vector.load %arg6[%124, %c0_64] : memref<16x128xf32, #tpu.memory_space<vmem>>, vector<1x128xf32>
    %c8_i32_65 = arith.constant 8 : i32
    %126 = arith.addi %c8_i32_65, %c6_i32 : i32
    %127 = arith.index_cast %126 : i32 to index
    %c0_66 = arith.constant 0 : index
    %128 = vector.load %arg6[%127, %c0_66] : memref<16x128xf32, #tpu.memory_space<vmem>>, vector<1x128xf32>
    %129 = tpu.concatenate %125, %128 in 0 : vector<1x128xf32>, vector<1x128xf32> -> vector<2x128xf32>
    %130 = arith.truncf %114 : vector<2x128xf32> to vector<2x128xbf16>
    %cst_67 = arith.constant dense<0.000000e+00> : vector<2x128xf32>
    %131 = tpu.matmul %130, %7, %cst_67 {dimension_numbers = #tpu.dot_dimension_numbers<[1], [0], [0], [1], [0, 0, 1, 1], [], []>} : vector<2x128xbf16>, vector<128x128xbf16>, vector<2x128xf32> -> vector<2x128xf32>
    %132 = arith.addf %129, %131 : vector<2x128xf32>
    %133 = math.tanh %132 : vector<2x128xf32>
    %134 = vector.extract_strided_slice %133 {offsets = [0, 0], sizes = [1, 128], strides = [1, 1]} : vector<2x128xf32> to vector<1x128xf32>
    %c0_i32_68 = arith.constant 0 : i32
    %135 = arith.addi %c0_i32_68, %c6_i32 : i32
    %136 = arith.index_cast %135 : i32 to index
    %c0_69 = arith.constant 0 : index
    %137 = vector.load %arg5[%136, %c0_69] : memref<16x128xf32, #tpu.memory_space<vmem>>, vector<1x128xf32>
    tpu.vector_store %arg5[%136, %c0_69], %134 {strides = array<i32>} : memref<16x128xf32, #tpu.memory_space<vmem>>, vector<1x128xf32>,
    %138 = vector.extract_strided_slice %133 {offsets = [1, 0], sizes = [1, 128], strides = [1, 1]} : vector<2x128xf32> to vector<1x128xf32>
    %c8_i32_70 = arith.constant 8 : i32
    %139 = arith.addi %c8_i32_70, %c6_i32 : i32
    %140 = arith.index_cast %139 : i32 to index
    %c0_71 = arith.constant 0 : index
    %141 = vector.load %arg5[%140, %c0_71] : memref<16x128xf32, #tpu.memory_space<vmem>>, vector<1x128xf32>
    tpu.vector_store %arg5[%140, %c0_71], %138 {strides = array<i32>} : memref<16x128xf32, #tpu.memory_space<vmem>>, vector<1x128xf32>,
    %c7_i32 = arith.constant 7 : i32
    %c0_i32_72 = arith.constant 0 : i32
    %142 = arith.addi %c0_i32_72, %c7_i32 : i32
    %143 = arith.index_cast %142 : i32 to index
    %c0_73 = arith.constant 0 : index
    %144 = vector.load %arg6[%143, %c0_73] : memref<16x128xf32, #tpu.memory_space<vmem>>, vector<1x128xf32>
    %c8_i32_74 = arith.constant 8 : i32
    %145 = arith.addi %c8_i32_74, %c7_i32 : i32
    %146 = arith.index_cast %145 : i32 to index
    %c0_75 = arith.constant 0 : index
    %147 = vector.load %arg6[%146, %c0_75] : memref<16x128xf32, #tpu.memory_space<vmem>>, vector<1x128xf32>
    %148 = tpu.concatenate %144, %147 in 0 : vector<1x128xf32>, vector<1x128xf32> -> vector<2x128xf32>
    %149 = arith.truncf %133 : vector<2x128xf32> to vector<2x128xbf16>
    %cst_76 = arith.constant dense<0.000000e+00> : vector<2x128xf32>
    %150 = tpu.matmul %149, %7, %cst_76 {dimension_numbers = #tpu.dot_dimension_numbers<[1], [0], [0], [1], [0, 0, 1, 1], [], []>} : vector<2x128xbf16>, vector<128x128xbf16>, vector<2x128xf32> -> vector<2x128xf32>
    %151 = arith.addf %148, %150 : vector<2x128xf32>
    %152 = math.tanh %151 : vector<2x128xf32>
    %153 = vector.extract_strided_slice %152 {offsets = [0, 0], sizes = [1, 128], strides = [1, 1]} : vector<2x128xf32> to vector<1x128xf32>
    %c0_i32_77 = arith.constant 0 : i32
    %154 = arith.addi %c0_i32_77, %c7_i32 : i32
    %155 = arith.index_cast %154 : i32 to index
    %c0_78 = arith.constant 0 : index
    %156 = vector.load %arg5[%155, %c0_78] : memref<16x128xf32, #tpu.memory_space<vmem>>, vector<1x128xf32>
    tpu.vector_store %arg5[%155, %c0_78], %153 {strides = array<i32>} : memref<16x128xf32, #tpu.memory_space<vmem>>, vector<1x128xf32>,
    %157 = vector.extract_strided_slice %152 {offsets = [1, 0], sizes = [1, 128], strides = [1, 1]} : vector<2x128xf32> to vector<1x128xf32>
    %c8_i32_79 = arith.constant 8 : i32
    %158 = arith.addi %c8_i32_79, %c7_i32 : i32
    %159 = arith.index_cast %158 : i32 to index
    %c0_80 = arith.constant 0 : index
    %160 = vector.load %arg5[%159, %c0_80] : memref<16x128xf32, #tpu.memory_space<vmem>>, vector<1x128xf32>
    tpu.vector_store %arg5[%159, %c0_80], %157 {strides = array<i32>} : memref<16x128xf32, #tpu.memory_space<vmem>>, vector<1x128xf32>,
    %c8_i32_81 = arith.constant 8 : i32
    return
  }
  func.func @transform_0(%arg0: i32) -> (i32, i32) {
    %c0_i32 = arith.constant 0 : i32
    %c0_i32_0 = arith.constant 0 : i32
    %c0_i32_1 = arith.constant 0 : i32
    return %c0_i32, %c0_i32_0 : i32, i32
  }
  func.func @transform_1(%arg0: i32) -> (i32, i32) {
    %c0_i32 = arith.constant 0 : i32
    %c0_i32_0 = arith.constant 0 : i32
    %c0_i32_1 = arith.constant 0 : i32
    return %c0_i32, %c0_i32_0 : i32, i32
  }
  func.func @transform_2(%arg0: i32) -> (i32, i32) {
    %c0_i32 = arith.constant 0 : i32
    %c0_i32_0 = arith.constant 0 : i32
    %c0_i32_1 = arith.constant 0 : i32
    return %c0_i32, %c0_i32_0 : i32, i32
  }
  func.func @transform_3(%arg0: i32) -> (i32, i32) {
    %c0_i32 = arith.constant 0 : i32
    %c0_i32_0 = arith.constant 0 : i32
    %c0_i32_1 = arith.constant 0 : i32
    return %c0_i32, %c0_i32_0 : i32, i32
  }
  func.func @transform_4(%arg0: i32) -> (i32, i32) {
    %c0_i32 = arith.constant 0 : i32
    %c0_i32_0 = arith.constant 0 : i32
    %c0_i32_1 = arith.constant 0 : i32
    return %c0_i32, %c0_i32_0 : i32, i32
  }
}

</mosaic_0001>

<llo_original>
// kernel: tpu_custom_call.1
$region0: #{tpu_custom_call.1}
  #allocation0 [shape = 'u32[]', space=smem, size = 0x4, offset = 0x4, fixed_abs, tag = 'smem constant byte address 0x4 - core index']
  #allocation1 [shape = 'u32[144,128]{1,0:T(1,128)}', space=vmem, size = 0x12000, scoped, tag = 'internal scratch']
  #allocation2 [shape = 'f32[16,128]{1,0:T(8,128)}', space=vmem, size = 0x2000, scoped, tag = 'scratch operand']
  %s0 = inlined_call_operand.hbm [shape: bf16[16,16], index: 0, kind: input, shape index: {}]
  %s1 = inlined_call_operand.hbm [shape: bf16[16,128], index: 1, kind: input, shape index: {}]
  %s2 = inlined_call_operand.hbm [shape: bf16[128,128], index: 2, kind: input, shape index: {}]
  %s3 = inlined_call_operand.vmem [shape: f32[1,128], index: 3, kind: input, shape index: {}]
  %s4 = inlined_call_operand.hbm [shape: f32[16,128], index: 4, kind: output, shape index: {}]
  %s5 = sld [smem:[#allocation0]]
  $region38: #{tpu_custom_call.1} parent=0
    _
  %s7 = ssub.s32 1, %s5
  %s8 = scalar_select 0, %s7, %s5
  $region1: #{tpu_custom_call.1} parent=0
    #allocation3 [shape = 'u8[4096]{0}', space=vmem, size = 0x1000, scoped, tag = 'input window, operand 0, single buffered']
    #allocation4 [shape = 's32[1]{0}', space=sflag, size = 0x4, scoped, tag = 'scoped memory for tpu_custom_call.1']
    #allocation5 [shape = 's32[1]{0}', space=sflag, size = 0x4, scoped, tag = 'scoped memory for tpu_custom_call.1']
    #allocation6 [shape = 'u8[4096]{0}', space=vmem, size = 0x1000, scoped, tag = 'input window, operand 1, single buffered']
    #allocation7 [shape = 's32[1]{0}', space=sflag, size = 0x4, scoped, tag = 'scoped memory for tpu_custom_call.1']
    #allocation8 [shape = 'u8[32768]{0}', space=vmem, size = 0x8000, scoped, tag = 'input window, operand 2, single buffered']
    #allocation9 [shape = 'u8[8192]{0}', space=vmem, size = 0x2000, scoped, tag = 'output window, operand 0, single buffered']
    %9 = vsyncpa [#allocation4], 0
    %10 = vsyncpa [#allocation7], 0
    %11 = vsyncpa [#allocation5], 0
    // Predicated region
    $region2: #{tpu_custom_call.1} parent=1 // pred_check
      _
    $region3: #{tpu_custom_call.1} parent=1 // pred_check_branch
      %13 = sbr.rel (0) target = $region5
    $region4: #{tpu_custom_call.1} parent=1 // pred_region
      %s15 = ssub.s32 128, 128
      %16 = vsyncadd [#allocation4], %s15
      %s17 = sshll.u32 [#allocation3], 4
      %s18 = int_to_ptr.vmem [resolvable:$true] %s17
      %23 = dma.hbm_to_vmem [thread:$0]  %s0, 128, %s18, [#allocation4], 64, 64, 4
    $region5: #{tpu_custom_call.1} parent=1 // pred_fallthru
      _
    // Predicated region
    $region6: #{tpu_custom_call.1} parent=1 // pred_check
      _
    $region7: #{tpu_custom_call.1} parent=1 // pred_check_branch
      %25 = sbr.rel (0) target = $region9
    $region8: #{tpu_custom_call.1} parent=1 // pred_region
      %s27 = ssub.s32 128, 128
      %28 = vsyncadd [#allocation7], %s27
      %s29 = sshll.u32 [#allocation6], 4
      %s30 = int_to_ptr.vmem [resolvable:$true] %s29
      %35 = dma.hbm_to_vmem [thread:$0]  %s1, 128, %s30, [#allocation7], 64, 64, 4
    $region9: #{tpu_custom_call.1} parent=1 // pred_fallthru
      _
    // Predicated region
    $region10: #{tpu_custom_call.1} parent=1 // pred_check
      _
    $region11: #{tpu_custom_call.1} parent=1 // pred_check_branch
      %37 = sbr.rel (0) target = $region13
    $region12: #{tpu_custom_call.1} parent=1 // pred_region
      %s39 = ssub.s32 1024, 1024
      %40 = vsyncadd [#allocation7], %s39
      %s41 = sshll.u32 [#allocation8], 4
      %s42 = int_to_ptr.vmem [resolvable:$true] %s41
      %47 = dma.hbm_to_vmem [thread:$0]  %s2, 1024, %s42, [#allocation7], 64, 64, 4
    $region13: #{tpu_custom_call.1} parent=1 // pred_fallthru
      _
    // Predicated region
    $region14: #{tpu_custom_call.1} parent=1 // pred_check
      _
    $region15: #{tpu_custom_call.1} parent=1 // pred_check_branch
      %49 = sbr.rel (0) target = $region17
    $region16: #{tpu_custom_call.1} parent=1 // pred_region
      _
    $region17: #{tpu_custom_call.1} parent=1 // pred_fallthru
      _
    // Predicated region
    $region18: #{tpu_custom_call.1} parent=1 // pred_check
      _
    $region19: #{tpu_custom_call.1} parent=1 // pred_check_branch
      %51 = sbr.rel (0) target = $region21
    $region20: #{tpu_custom_call.1} parent=1 // pred_region
      %52 = dma.done [#allocation4], 128
    $region21: #{tpu_custom_call.1} parent=1 // pred_fallthru
      _
    // Predicated region
    $region22: #{tpu_custom_call.1} parent=1 // pred_check
      _
    $region23: #{tpu_custom_call.1} parent=1 // pred_check_branch
      %54 = sbr.rel (0) target = $region25
    $region24: #{tpu_custom_call.1} parent=1 // pred_region
      %55 = dma.done [#allocation7], 128
    $region25: #{tpu_custom_call.1} parent=1 // pred_fallthru
      _
    // Predicated region
    $region26: #{tpu_custom_call.1} parent=1 // pred_check
      _
    $region27: #{tpu_custom_call.1} parent=1 // pred_check_branch
      %57 = sbr.rel (0) target = $region29
    $region28: #{tpu_custom_call.1} parent=1 // pred_region
      %58 = dma.done [#allocation7], 1024
    $region29: #{tpu_custom_call.1} parent=1 // pred_fallthru
      _
    %v60 = vld [vmem:[#allocation3] sm:$0xf]
    %v61 = vld [vmem:[#allocation3 + $0x4] sm:$0xf]
    %v62 = vld [vmem:[#allocation6] sm:$0xf]
    %v63 = vld [vmem:[#allocation6 + $0x4] sm:$0xf]
    %v64 = vld [vmem:[%s3] sm:$0x1]
    %v66 = vlaneseq
    %v67 = vshrl.u32 %v66, 7
    %v68 = vsub.s32 0, %v67
    %v69 = vrot.slane %v64, %v68
    %v73 = vunpack.c.l.b16 %v60
    %v74 = vunpack.c.l.b16 %v61
    %v75 = vpack.c.b16 %v74, %v73
    %v78 = vunpack.c.l.b16 %v62
    %v79 = vunpack.c.l.b16 %v63
    %v80 = vpack.c.b16 %v79, %v78
    %vm82 = vcmask 130048
    %v84 = vsel %vm82, %v75, 0
    %86 = vmatprep.subr.bf16.mxu0 0
    %87 = vmatpush1.bf16.msra.mxu0 %v80
    %88 = vmatprep.subr.bf16.mxu0 0
    %89 = vmatpush1.bf16.msra.mxu0 0
    %90 = vmatprep.subr.bf16.mxu0 0
    %91 = vmatpush1.bf16.msra.mxu0 0
    %92 = vmatprep.subr.bf16.mxu0 0
    %93 = vmatpush1.bf16.msra.mxu0 0
    %94 = vmatprep.subr.bf16.mxu0 0
    %95 = vmatpush1.bf16.msra.mxu0 0
    %96 = vmatprep.subr.bf16.mxu0 0
    %97 = vmatpush1.bf16.msra.mxu0 0
    %98 = vmatprep.subr.bf16.mxu0 0
    %99 = vmatpush1.bf16.msra.mxu0 0
    %100 = vmatprep.subr.bf16.mxu0 0
    %101 = vmatpush1.bf16.msra.mxu0 0
    %102 = vmatprep.subr.bf16.mxu0 0
    %103 = vmatpush1.bf16.msra.mxu0 0
    %104 = vmatprep.subr.bf16.mxu0 0
    %105 = vmatpush1.bf16.msra.mxu0 0
    %106 = vmatprep.subr.bf16.mxu0 0
    %107 = vmatpush1.bf16.msra.mxu0 0
    %108 = vmatprep.subr.bf16.mxu0 0
    %109 = vmatpush1.bf16.msra.mxu0 0
    %110 = vmatprep.subr.bf16.mxu0 0
    %111 = vmatpush1.bf16.msra.mxu0 0
    %112 = vmatprep.subr.bf16.mxu0 0
    %113 = vmatpush1.bf16.msra.mxu0 0
    %114 = vmatprep.subr.bf16.mxu0 0
    %115 = vmatpush1.bf16.msra.mxu0 0
    %116 = vmatprep.subr.bf16.mxu0 0
    %117 = vmatpush1.bf16.msra.mxu0 0
    %118 = vmatprep.mubr.bf16.mxu0 0
    %119 = vmatmul.mubr.bf16.gmra.mrb[0].mxu0 %v84
    %v120 = vpop.f32.mrb[0].mxu0
    %v121 = vadd.f32 %v69, %v120
    %v122 = vpop.f32.mrb[0].mxu0
    %v123 = vpop.f32.mrb[0].mxu0
    %v124 = vadd.f32 %v69, %v123
    %v125 = vpop.f32.mrb[0].mxu0
    %126 = vdwg.mxu0
    %127 = vst [vmem:[#allocation2] sm:$0xff] %v121
    %128 = vst [vmem:[#allocation2 + $0x8] sm:$0xff] %v124
    %v129 = vld [vmem:[#allocation8] sm:$0xf]
    %v130 = vld [vmem:[#allocation8 + $0x4] sm:$0xf]
    %v131 = vld [vmem:[#allocation8 + $0x8] sm:$0xf]
    %v132 = vld [vmem:[#allocation8 + $0xc] sm:$0xf]
    %v133 = vld [vmem:[#allocation8 + $0x10] sm:$0xf]
    %v134 = vld [vmem:[#allocation8 + $0x14] sm:$0xf]
    %v135 = vld [vmem:[#allocation8 + $0x18] sm:$0xf]
    %v136 = vld [vmem:[#allocation8 + $0x1c] sm:$0xf]
    %v137 = vld [vmem:[#allocation8 + $0x20] sm:$0xf]
    %v138 = vld [vmem:[#allocation8 + $0x24] sm:$0xf]
    %v139 = vld [vmem:[#allocation8 + $0x28] sm:$0xf]
    %v140 = vld [vmem:[#allocation8 + $0x2c] sm:$0xf]
    %v141 = vld [vmem:[#allocation8 + $0x30] sm:$0xf]
    %v142 = vld [vmem:[#allocation8 + $0x34] sm:$0xf]
    %v143 = vld [vmem:[#allocation8 + $0x38] sm:$0xf]
    %v144 = vld [vmem:[#allocation8 + $0x3c] sm:$0xf]
    %v145 = vld [vmem:[#allocation2] sm:$0x1]
    %v146 = vld [vmem:[#allocation2 + $0x8] sm:$0x1]
    %v148 = vrot.slane %v146, 7
    %vm150 = vcmask 1040384
    %v151 = vsel %vm150, %v145, %v148
    %v168 = vunpack.c.l.b16 %v129
    %v169 = vunpack.c.l.b16 %v130
    %v170 = vunpack.c.l.b16 %v131
    %v171 = vunpack.c.l.b16 %v132
    %v172 = vunpack.c.l.b16 %v133
    %v173 = vunpack.c.l.b16 %v134
    %v174 = vunpack.c.l.b16 %v135
    %v175 = vunpack.c.l.b16 %v136
    %v176 = vunpack.c.l.b16 %v137
    %v177 = vunpack.c.l.b16 %v138
    %v178 = vunpack.c.l.b16 %v139
    %v179 = vunpack.c.l.b16 %v140
    %v180 = vunpack.c.l.b16 %v141
    %v181 = vunpack.c.l.b16 %v142
    %v182 = vunpack.c.l.b16 %v143
    %v183 = vunpack.c.l.b16 %v144
    %v184 = vpack.c.b16 %v169, %v168
    %v185 = vpack.c.b16 %v171, %v170
    %v186 = vpack.c.b16 %v173, %v172
    %v187 = vpack.c.b16 %v175, %v174
    %v188 = vpack.c.b16 %v177, %v176
    %v189 = vpack.c.b16 %v179, %v178
    %v190 = vpack.c.b16 %v181, %v180
    %v191 = vpack.c.b16 %v183, %v182
    %200 = vmatprep.subr.bf16.mxu0 0
    %201 = vmatpush1.bf16.msra.mxu0 %v184
    %202 = vmatprep.subr.bf16.mxu0 0
    %203 = vmatpush1.bf16.msra.mxu0 %v185
    %204 = vmatprep.subr.bf16.mxu0 0
    %205 = vmatpush1.bf16.msra.mxu0 %v186
    %206 = vmatprep.subr.bf16.mxu0 0
    %207 = vmatpush1.bf16.msra.mxu0 %v187
    %208 = vmatprep.subr.bf16.mxu0 0
    %209 = vmatpush1.bf16.msra.mxu0 %v188
    %210 = vmatprep.subr.bf16.mxu0 0
    %211 = vmatpush1.bf16.msra.mxu0 %v189
    %212 = vmatprep.subr.bf16.mxu0 0
    %213 = vmatpush1.bf16.msra.mxu0 %v190
    %214 = vmatprep.subr.bf16.mxu0 0
    %215 = vmatpush1.bf16.msra.mxu0 %v191
    %216 = vmatprep.subr.bf16.mxu0 0
    %217 = vmatpush1.bf16.msra.mxu0 0
    %218 = vmatprep.subr.bf16.mxu0 0
    %219 = vmatpush1.bf16.msra.mxu0 0
    %220 = vmatprep.subr.bf16.mxu0 0
    %221 = vmatpush1.bf16.msra.mxu0 0
    %222 = vmatprep.subr.bf16.mxu0 0
    %223 = vmatpush1.bf16.msra.mxu0 0
    %224 = vmatprep.subr.bf16.mxu0 0
    %225 = vmatpush1.bf16.msra.mxu0 0
    %226 = vmatprep.subr.bf16.mxu0 0
    %227 = vmatpush1.bf16.msra.mxu0 0
    %228 = vmatprep.subr.bf16.mxu0 0
    %229 = vmatpush1.bf16.msra.mxu0 0
    %230 = vmatprep.subr.bf16.mxu0 0
    %231 = vmatpush1.bf16.msra.mxu0 0
    %232 = vmatprep.mubr.bf16.mxu0 0
    %233 = vmatmul.mubr.bf16.gmra.mrb[0].mxu0 0
    %v234 = vpop.f32.mrb[0].mxu0
    %v235 = vadd.f32 0.0, %v234
    %v236 = vpop.f32.mrb[0].mxu0
    %v237 = vpop.f32.mrb[0].mxu0
    %v238 = vpop.f32.mrb[0].mxu0
    %239 = vdwg.mxu0
    %v240 = vadd.f32 %v151, %v235
    %v241 = vtanh.pop %v240
    %242 = vst [vmem:[#allocation9] sm:$0x1] %v241
    %243 = vst [vmem:[#allocation9 + $0x7] sm:$0x2] %v241
    %v244 = vld [vmem:[#allocation2 + $0x1] sm:$0x1]
    %v245 = vld [vmem:[#allocation2 + $0x9] sm:$0x1]
    %v247 = vrot.slane %v245, 7
    %v249 = vsel %vm150, %v244, %v247
    %v250 = vpack.c.bf16 %v241, %v241
    %251 = vmatprep.subr.bf16.mxu0 0
    %252 = vmatpush1.bf16.msra.mxu0 %v184
    %253 = vmatprep.subr.bf16.mxu0 0
    %254 = vmatpush1.bf16.msra.mxu0 %v185
    %255 = vmatprep.subr.bf16.mxu0 0
    %256 = vmatpush1.bf16.msra.mxu0 %v186
    %257 = vmatprep.subr.bf16.mxu0 0
    %258 = vmatpush1.bf16.msra.mxu0 %v187
    %259 = vmatprep.subr.bf16.mxu0 0
    %260 = vmatpush1.bf16.msra.mxu0 %v188
    %261 = vmatprep.subr.bf16.mxu0 0
    %262 = vmatpush1.bf16.msra.mxu0 %v189
    %263 = vmatprep.subr.bf16.mxu0 0
    %264 = vmatpush1.bf16.msra.mxu0 %v190
    %265 = vmatprep.subr.bf16.mxu0 0
    %266 = vmatpush1.bf16.msra.mxu0 %v191
    %267 = vmatprep.subr.bf16.mxu0 0
    %268 = vmatpush1.bf16.msra.mxu0 0
    %269 = vmatprep.subr.bf16.mxu0 0
    %270 = vmatpush1.bf16.msra.mxu0 0
    %271 = vmatprep.subr.bf16.mxu0 0
    %272 = vmatpush1.bf16.msra.mxu0 0
    %273 = vmatprep.subr.bf16.mxu0 0
    %274 = vmatpush1.bf16.msra.mxu0 0
    %275 = vmatprep.subr.bf16.mxu0 0
    %276 = vmatpush1.bf16.msra.mxu0 0
    %277 = vmatprep.subr.bf16.mxu0 0
    %278 = vmatpush1.bf16.msra.mxu0 0
    %279 = vmatprep.subr.bf16.mxu0 0
    %280 = vmatpush1.bf16.msra.mxu0 0
    %281 = vmatprep.subr.bf16.mxu0 0
    %282 = vmatpush1.bf16.msra.mxu0 0
    %283 = vmatprep.mubr.bf16.mxu0 0
    %284 = vmatmul.mubr.bf16.gmra.mrb[0].mxu0 %v250
    %v285 = vpop.f32.mrb[0].mxu0
    %v286 = vadd.f32 0.0, %v285
    %v287 = vpop.f32.mrb[0].mxu0
    %v288 = vpop.f32.mrb[0].mxu0
    %v289 = vpop.f32.mrb[0].mxu0
    %290 = vdwg.mxu0
    %v291 = vadd.f32 %v249, %v286
    %v292 = vtanh.pop %v291
    %293 = vst [vmem:[#allocation9 + $0x1] sm:$0x1] %v292
    %294 = vst [vmem:[#allocation9 + $0x8] sm:$0x2] %v292
    %v295 = vld [vmem:[#allocation2 + $0x2] sm:$0x1]
    %v296 = vld [vmem:[#allocation2 + $0xa] sm:$0x1]
    %v298 = vrot.slane %v296, 7
    %v300 = vsel %vm150, %v295, %v298
    %v301 = vpack.c.bf16 %v292, %v292
    %302 = vmatprep.subr.bf16.mxu0 0
    %303 = vmatpush1.bf16.msra.mxu0 %v184
    %304 = vmatprep.subr.bf16.mxu0 0
    %305 = vmatpush1.bf16.msra.mxu0 %v185
    %306 = vmatprep.subr.bf16.mxu0 0
    %307 = vmatpush1.bf16.msra.mxu0 %v186
    %308 = vmatprep.subr.bf16.mxu0 0
    %309 = vmatpush1.bf16.msra.mxu0 %v187
    %310 = vmatprep.subr.bf16.mxu0 0
    %311 = vmatpush1.bf16.msra.mxu0 %v188
    %312 = vmatprep.subr.bf16.mxu0 0
    %313 = vmatpush1.bf16.msra.mxu0 %v189
    %314 = vmatprep.subr.bf16.mxu0 0
    %315 = vmatpush1.bf16.msra.mxu0 %v190
    %316 = vmatprep.subr.bf16.mxu0 0
    %317 = vmatpush1.bf16.msra.mxu0 %v191
    %318 = vmatprep.subr.bf16.mxu0 0
    %319 = vmatpush1.bf16.msra.mxu0 0
    %320 = vmatprep.subr.bf16.mxu0 0
    %321 = vmatpush1.bf16.msra.mxu0 0
    %322 = vmatprep.subr.bf16.mxu0 0
    %323 = vmatpush1.bf16.msra.mxu0 0
    %324 = vmatprep.subr.bf16.mxu0 0
    %325 = vmatpush1.bf16.msra.mxu0 0
    %326 = vmatprep.subr.bf16.mxu0 0
    %327 = vmatpush1.bf16.msra.mxu0 0
    %328 = vmatprep.subr.bf16.mxu0 0
    %329 = vmatpush1.bf16.msra.mxu0 0
    %330 = vmatprep.subr.bf16.mxu0 0
    %331 = vmatpush1.bf16.msra.mxu0 0
    %332 = vmatprep.subr.bf16.mxu0 0
    %333 = vmatpush1.bf16.msra.mxu0 0
    %334 = vmatprep.mubr.bf16.mxu0 0
    %335 = vmatmul.mubr.bf16.gmra.mrb[0].mxu0 %v301
    %v336 = vpop.f32.mrb[0].mxu0
    %v337 = vadd.f32 0.0, %v336
    %v338 = vpop.f32.mrb[0].mxu0
    %v339 = vpop.f32.mrb[0].mxu0
    %v340 = vpop.f32.mrb[0].mxu0
    %341 = vdwg.mxu0
    %v342 = vadd.f32 %v300, %v337
    %v343 = vtanh.pop %v342
    %344 = vst [vmem:[#allocation9 + $0x2] sm:$0x1] %v343
    %345 = vst [vmem:[#allocation9 + $0x9] sm:$0x2] %v343
    %v346 = vld [vmem:[#allocation2 + $0x3] sm:$0x1]
    %v347 = vld [vmem:[#allocation2 + $0xb] sm:$0x1]
    %v349 = vrot.slane %v347, 7
    %v351 = vsel %vm150, %v346, %v349
    %v352 = vpack.c.bf16 %v343, %v343
    %353 = vmatprep.subr.bf16.mxu0 0
    %354 = vmatpush1.bf16.msra.mxu0 %v184
    %355 = vmatprep.subr.bf16.mxu0 0
    %356 = vmatpush1.bf16.msra.mxu0 %v185
    %357 = vmatprep.subr.bf16.mxu0 0
    %358 = vmatpush1.bf16.msra.mxu0 %v186
    %359 = vmatprep.subr.bf16.mxu0 0
    %360 = vmatpush1.bf16.msra.mxu0 %v187
    %361 = vmatprep.subr.bf16.mxu0 0
    %362 = vmatpush1.bf16.msra.mxu0 %v188
    %363 = vmatprep.subr.bf16.mxu0 0
    %364 = vmatpush1.bf16.msra.mxu0 %v189
    %365 = vmatprep.subr.bf16.mxu0 0
    %366 = vmatpush1.bf16.msra.mxu0 %v190
    %367 = vmatprep.subr.bf16.mxu0 0
    %368 = vmatpush1.bf16.msra.mxu0 %v191
    %369 = vmatprep.subr.bf16.mxu0 0
    %370 = vmatpush1.bf16.msra.mxu0 0
    %371 = vmatprep.subr.bf16.mxu0 0
    %372 = vmatpush1.bf16.msra.mxu0 0
    %373 = vmatprep.subr.bf16.mxu0 0
    %374 = vmatpush1.bf16.msra.mxu0 0
    %375 = vmatprep.subr.bf16.mxu0 0
    %376 = vmatpush1.bf16.msra.mxu0 0
    %377 = vmatprep.subr.bf16.mxu0 0
    %378 = vmatpush1.bf16.msra.mxu0 0
    %379 = vmatprep.subr.bf16.mxu0 0
    %380 = vmatpush1.bf16.msra.mxu0 0
    %381 = vmatprep.subr.bf16.mxu0 0
    %382 = vmatpush1.bf16.msra.mxu0 0
    %383 = vmatprep.subr.bf16.mxu0 0
    %384 = vmatpush1.bf16.msra.mxu0 0
    %385 = vmatprep.mubr.bf16.mxu0 0
    %386 = vmatmul.mubr.bf16.gmra.mrb[0].mxu0 %v352
    %v387 = vpop.f32.mrb[0].mxu0
    %v388 = vadd.f32 0.0, %v387
    %v389 = vpop.f32.mrb[0].mxu0
    %v390 = vpop.f32.mrb[0].mxu0
    %v391 = vpop.f32.mrb[0].mxu0
    %392 = vdwg.mxu0
    %v393 = vadd.f32 %v351, %v388
    %v394 = vtanh.pop %v393
    %395 = vst [vmem:[#allocation9 + $0x3] sm:$0x1] %v394
    %396 = vst [vmem:[#allocation9 + $0xa] sm:$0x2] %v394
    %v397 = vld [vmem:[#allocation2 + $0x4] sm:$0x1]
    %v398 = vld [vmem:[#allocation2 + $0xc] sm:$0x1]
    %v400 = vrot.slane %v398, 7
    %v402 = vsel %vm150, %v397, %v400
    %v403 = vpack.c.bf16 %v394, %v394
    %404 = vmatprep.subr.bf16.mxu0 0
    %405 = vmatpush1.bf16.msra.mxu0 %v184
    %406 = vmatprep.subr.bf16.mxu0 0
    %407 = vmatpush1.bf16.msra.mxu0 %v185
    %408 = vmatprep.subr.bf16.mxu0 0
    %409 = vmatpush1.bf16.msra.mxu0 %v186
    %410 = vmatprep.subr.bf16.mxu0 0
    %411 = vmatpush1.bf16.msra.mxu0 %v187
    %412 = vmatprep.subr.bf16.mxu0 0
    %413 = vmatpush1.bf16.msra.mxu0 %v188
    %414 = vmatprep.subr.bf16.mxu0 0
    %415 = vmatpush1.bf16.msra.mxu0 %v189
    %416 = vmatprep.subr.bf16.mxu0 0
    %417 = vmatpush1.bf16.msra.mxu0 %v190
    %418 = vmatprep.subr.bf16.mxu0 0
    %419 = vmatpush1.bf16.msra.mxu0 %v191
    %420 = vmatprep.subr.bf16.mxu0 0
    %421 = vmatpush1.bf16.msra.mxu0 0
    %422 = vmatprep.subr.bf16.mxu0 0
    %423 = vmatpush1.bf16.msra.mxu0 0
    %424 = vmatprep.subr.bf16.mxu0 0
    %425 = vmatpush1.bf16.msra.mxu0 0
    %426 = vmatprep.subr.bf16.mxu0 0
    %427 = vmatpush1.bf16.msra.mxu0 0
    %428 = vmatprep.subr.bf16.mxu0 0
    %429 = vmatpush1.bf16.msra.mxu0 0
    %430 = vmatprep.subr.bf16.mxu0 0
    %431 = vmatpush1.bf16.msra.mxu0 0
    %432 = vmatprep.subr.bf16.mxu0 0
    %433 = vmatpush1.bf16.msra.mxu0 0
    %434 = vmatprep.subr.bf16.mxu0 0
    %435 = vmatpush1.bf16.msra.mxu0 0
    %436 = vmatprep.mubr.bf16.mxu0 0
    %437 = vmatmul.mubr.bf16.gmra.mrb[0].mxu0 %v403
    %v438 = vpop.f32.mrb[0].mxu0
    %v439 = vadd.f32 0.0, %v438
    %v440 = vpop.f32.mrb[0].mxu0
    %v441 = vpop.f32.mrb[0].mxu0
    %v442 = vpop.f32.mrb[0].mxu0
    %443 = vdwg.mxu0
    %v444 = vadd.f32 %v402, %v439
    %v445 = vtanh.pop %v444
    %446 = vst [vmem:[#allocation9 + $0x4] sm:$0x1] %v445
    %447 = vst [vmem:[#allocation9 + $0xb] sm:$0x2] %v445
    %v448 = vld [vmem:[#allocation2 + $0x5] sm:$0x1]
    %v449 = vld [vmem:[#allocation2 + $0xd] sm:$0x1]
    %v451 = vrot.slane %v449, 7
    %v453 = vsel %vm150, %v448, %v451
    %v454 = vpack.c.bf16 %v445, %v445
    %455 = vmatprep.subr.bf16.mxu0 0
    %456 = vmatpush1.bf16.msra.mxu0 %v184
    %457 = vmatprep.subr.bf16.mxu0 0
    %458 = vmatpush1.bf16.msra.mxu0 %v185
    %459 = vmatprep.subr.bf16.mxu0 0
    %460 = vmatpush1.bf16.msra.mxu0 %v186
    %461 = vmatprep.subr.bf16.mxu0 0
    %462 = vmatpush1.bf16.msra.mxu0 %v187
    %463 = vmatprep.subr.bf16.mxu0 0
    %464 = vmatpush1.bf16.msra.mxu0 %v188
    %465 = vmatprep.subr.bf16.mxu0 0
    %466 = vmatpush1.bf16.msra.mxu0 %v189
    %467 = vmatprep.subr.bf16.mxu0 0
    %468 = vmatpush1.bf16.msra.mxu0 %v190
    %469 = vmatprep.subr.bf16.mxu0 0
    %470 = vmatpush1.bf16.msra.mxu0 %v191
    %471 = vmatprep.subr.bf16.mxu0 0
    %472 = vmatpush1.bf16.msra.mxu0 0
    %473 = vmatprep.subr.bf16.mxu0 0
    %474 = vmatpush1.bf16.msra.mxu0 0
    %475 = vmatprep.subr.bf16.mxu0 0
    %476 = vmatpush1.bf16.msra.mxu0 0
    %477 = vmatprep.subr.bf16.mxu0 0
    %478 = vmatpush1.bf16.msra.mxu0 0
    %479 = vmatprep.subr.bf16.mxu0 0
    %480 = vmatpush1.bf16.msra.mxu0 0
    %481 = vmatprep.subr.bf16.mxu0 0
    %482 = vmatpush1.bf16.msra.mxu0 0
    %483 = vmatprep.subr.bf16.mxu0 0
    %484 = vmatpush1.bf16.msra.mxu0 0
    %485 = vmatprep.subr.bf16.mxu0 0
    %486 = vmatpush1.bf16.msra.mxu0 0
    %487 = vmatprep.mubr.bf16.mxu0 0
    %488 = vmatmul.mubr.bf16.gmra.mrb[0].mxu0 %v454
    %v489 = vpop.f32.mrb[0].mxu0
    %v490 = vadd.f32 0.0, %v489
    %v491 = vpop.f32.mrb[0].mxu0
    %v492 = vpop.f32.mrb[0].mxu0
    %v493 = vpop.f32.mrb[0].mxu0
    %494 = vdwg.mxu0
    %v495 = vadd.f32 %v453, %v490
    %v496 = vtanh.pop %v495
    %497 = vst [vmem:[#allocation9 + $0x5] sm:$0x1] %v496
    %498 = vst [vmem:[#allocation9 + $0xc] sm:$0x2] %v496
    %v499 = vld [vmem:[#allocation2 + $0x6] sm:$0x1]
    %v500 = vld [vmem:[#allocation2 + $0xe] sm:$0x1]
    %v502 = vrot.slane %v500, 7
    %v504 = vsel %vm150, %v499, %v502
    %v505 = vpack.c.bf16 %v496, %v496
    %506 = vmatprep.subr.bf16.mxu0 0
    %507 = vmatpush1.bf16.msra.mxu0 %v184
    %508 = vmatprep.subr.bf16.mxu0 0
    %509 = vmatpush1.bf16.msra.mxu0 %v185
    %510 = vmatprep.subr.bf16.mxu0 0
    %511 = vmatpush1.bf16.msra.mxu0 %v186
    %512 = vmatprep.subr.bf16.mxu0 0
    %513 = vmatpush1.bf16.msra.mxu0 %v187
    %514 = vmatprep.subr.bf16.mxu0 0
    %515 = vmatpush1.bf16.msra.mxu0 %v188
    %516 = vmatprep.subr.bf16.mxu0 0
    %517 = vmatpush1.bf16.msra.mxu0 %v189
    %518 = vmatprep.subr.bf16.mxu0 0
    %519 = vmatpush1.bf16.msra.mxu0 %v190
    %520 = vmatprep.subr.bf16.mxu0 0
    %521 = vmatpush1.bf16.msra.mxu0 %v191
    %522 = vmatprep.subr.bf16.mxu0 0
    %523 = vmatpush1.bf16.msra.mxu0 0
    %524 = vmatprep.subr.bf16.mxu0 0
    %525 = vmatpush1.bf16.msra.mxu0 0
    %526 = vmatprep.subr.bf16.mxu0 0
    %527 = vmatpush1.bf16.msra.mxu0 0
    %528 = vmatprep.subr.bf16.mxu0 0
    %529 = vmatpush1.bf16.msra.mxu0 0
    %530 = vmatprep.subr.bf16.mxu0 0
    %531 = vmatpush1.bf16.msra.mxu0 0
    %532 = vmatprep.subr.bf16.mxu0 0
    %533 = vmatpush1.bf16.msra.mxu0 0
    %534 = vmatprep.subr.bf16.mxu0 0
    %535 = vmatpush1.bf16.msra.mxu0 0
    %536 = vmatprep.subr.bf16.mxu0 0
    %537 = vmatpush1.bf16.msra.mxu0 0
    %538 = vmatprep.mubr.bf16.mxu0 0
    %539 = vmatmul.mubr.bf16.gmra.mrb[0].mxu0 %v505
    %v540 = vpop.f32.mrb[0].mxu0
    %v541 = vadd.f32 0.0, %v540
    %v542 = vpop.f32.mrb[0].mxu0
    %v543 = vpop.f32.mrb[0].mxu0
    %v544 = vpop.f32.mrb[0].mxu0
    %545 = vdwg.mxu0
    %v546 = vadd.f32 %v504, %v541
    %v547 = vtanh.pop %v546
    %548 = vst [vmem:[#allocation9 + $0x6] sm:$0x1] %v547
    %549 = vst [vmem:[#allocation9 + $0xd] sm:$0x2] %v547
    %v550 = vld [vmem:[#allocation2 + $0x7] sm:$0x1]
    %v551 = vld [vmem:[#allocation2 + $0xf] sm:$0x1]
    %v553 = vrot.slane %v551, 7
    %v555 = vsel %vm150, %v550, %v553
    %v556 = vpack.c.bf16 %v547, %v547
    %557 = vmatprep.subr.bf16.mxu0 0
    %558 = vmatpush1.bf16.msra.mxu0 %v184
    %559 = vmatprep.subr.bf16.mxu0 0
    %560 = vmatpush1.bf16.msra.mxu0 %v185
    %561 = vmatprep.subr.bf16.mxu0 0
    %562 = vmatpush1.bf16.msra.mxu0 %v186
    %563 = vmatprep.subr.bf16.mxu0 0
    %564 = vmatpush1.bf16.msra.mxu0 %v187
    %565 = vmatprep.subr.bf16.mxu0 0
    %566 = vmatpush1.bf16.msra.mxu0 %v188
    %567 = vmatprep.subr.bf16.mxu0 0
    %568 = vmatpush1.bf16.msra.mxu0 %v189
    %569 = vmatprep.subr.bf16.mxu0 0
    %570 = vmatpush1.bf16.msra.mxu0 %v190
    %571 = vmatprep.subr.bf16.mxu0 0
    %572 = vmatpush1.bf16.msra.mxu0 %v191
    %573 = vmatprep.subr.bf16.mxu0 0
    %574 = vmatpush1.bf16.msra.mxu0 0
    %575 = vmatprep.subr.bf16.mxu0 0
    %576 = vmatpush1.bf16.msra.mxu0 0
    %577 = vmatprep.subr.bf16.mxu0 0
    %578 = vmatpush1.bf16.msra.mxu0 0
    %579 = vmatprep.subr.bf16.mxu0 0
    %580 = vmatpush1.bf16.msra.mxu0 0
    %581 = vmatprep.subr.bf16.mxu0 0
    %582 = vmatpush1.bf16.msra.mxu0 0
    %583 = vmatprep.subr.bf16.mxu0 0
    %584 = vmatpush1.bf16.msra.mxu0 0
    %585 = vmatprep.subr.bf16.mxu0 0
    %586 = vmatpush1.bf16.msra.mxu0 0
    %587 = vmatprep.subr.bf16.mxu0 0
    %588 = vmatpush1.bf16.msra.mxu0 0
    %589 = vmatprep.mubr.bf16.mxu0 0
    %590 = vmatmul.mubr.bf16.gmra.mrb[0].mxu0 %v556
    %v591 = vpop.f32.mrb[0].mxu0
    %v592 = vadd.f32 0.0, %v591
    %v593 = vpop.f32.mrb[0].mxu0
    %v594 = vpop.f32.mrb[0].mxu0
    %v595 = vpop.f32.mrb[0].mxu0
    %596 = vdwg.mxu0
    %v597 = vadd.f32 %v555, %v592
    %v598 = vtanh.pop %v597
    %599 = vst [vmem:[#allocation9 + $0x7] sm:$0x1] %v598
    %600 = vst [vmem:[#allocation9 + $0xe] sm:$0x2] %v598
    // Predicated region
    $region30: #{tpu_custom_call.1} parent=1 // pred_check
      _
    $region31: #{tpu_custom_call.1} parent=1 // pred_check_branch
      %602 = sbr.rel (0) target = $region33
    $region32: #{tpu_custom_call.1} parent=1 // pred_region
      %s604 = ssub.s32 256, 256
      %605 = vsyncadd [#allocation5], %s604
      %s606 = sshll.u32 [#allocation9], 4
      %s607 = int_to_ptr.vmem [resolvable:$true] %s606
      %612 = dma.vmem_to_hbm [thread:$0]  %s607, 256, %s4, [#allocation5], 128, 128, 8
    $region33: #{tpu_custom_call.1} parent=1 // pred_fallthru
      _
    // Predicated region
    $region34: #{tpu_custom_call.1} parent=1 // pred_check
      _
    $region35: #{tpu_custom_call.1} parent=1 // pred_check_branch
      %614 = sbr.rel (0) target = $region37
    $region36: #{tpu_custom_call.1} parent=1 // pred_region
      %615 = dma.done [#allocation5], 256
    $region37: #{tpu_custom_call.1} parent=1 // pred_fallthru
      _
    %616 = vsyncpa [#allocation4], 1
    %617 = vsyncpa [#allocation7], 1
    %618 = vsyncpa [#allocation5], 1

</llo_original>
